<compile_context>
chip_gen: v5e
topology: v5e:2x2
jax: 0.10.0
libtpu: 0.0.40
codegen_flags: <defaults>
</compile_context>

<pallas_src>
import functools

import jax
import jax.numpy as jnp
import numpy as np
from jax.experimental import pallas as pl
from jax.experimental.pallas import tpu as pltpu

# ---------------- problem sizes (small, consistent with the module) ---------
B = 2            # batch
HID = 32         # hidden_dim  (channel dim of NCHW input x)
LAT = 8          # latent_dim
H = W = 16       # spatial  -> HW = 256 (lane-dense: multiple of 128)
LAYERS = 2       # layer_num
HW = H * W


def _tensorcores_per_chip():
    """2 on v7x (2 TCs/chip), else 1 (v5e/v6e).  Conservative string match."""
    try:
        kind = jax.devices()[0].device_kind.lower()
    except Exception:
        return 1
    return 2 if ("v7" in kind or "7x" in kind) else 1


# ---------------------------- Pallas kernel ---------------------------------
def hypernet_fwd_kernel(layer_num, batch_per_step,
                        x_ref, var_ref, pw_ref, pb_ref, sc_ref,
                        win_ref, bin_ref, wout_ref, bout_ref, o_ref):
    # x_ref    : (BPS, HID, HW)   NCHW input, spatial flattened (pixels on lanes)
    # var_ref  : (BPS, LAT, HW)   NCHW latent, spatial flattened
    # pw_ref   : (LAYERS*LAT, LAT)   stacked param_projs[l].weight
    # pb_ref   : (LAYERS*LAT, 1)     stacked param_projs[l].bias
    # sc_ref   : (LAYERS,)  SMEM     softplus(scales)
    # win_ref  : (LAT, HID)   bin_ref : (LAT, 1)    (in_proj, used as W @ x)
    # wout_ref : (HID, LAT)   bout_ref: (HID, 1)    (out_proj, used as W @ r)
    # o_ref    : (BPS, HID, HW)  NCHW output
    hw = x_ref.shape[-1]
    lat = win_ref.shape[0]

    # Fold the batch onto the lane axis -> (C, BPS*HW) slabs.  HW is a multiple
    # of 128, so every concat boundary is on a lane-tile edge (cheap).
    if batch_per_step == 1:
        xs = x_ref[0]                                     # (HID, HW)
        vs = var_ref[0]                                   # (LAT, HW)
    else:
        xs = jnp.concatenate([x_ref[b] for b in range(batch_per_step)], axis=-1)
        vs = jnp.concatenate([var_ref[b] for b in range(batch_per_step)], axis=-1)

    # in_proj:  r = W_in @ x + b_in  -> (LAT, BPS*HW)
    r = jnp.dot(win_ref[...], xs,
                preferred_element_type=jnp.float32) + bin_ref[...]

    # All layers' projection vectors in ONE dot, off the r-dependency chain:
    #   vecs = [W_0; W_1; ...] @ var + [b_0; b_1; ...]  -> (LAYERS*LAT, BPS*HW)
    vecs = jnp.dot(pw_ref[...], vs,
                   preferred_element_type=jnp.float32) + pb_ref[...]

    # Fused get_weights + per-pixel matmul.  Per pixel n:
    #   M_l[n] = vec[:,n] vec[:,n]^T + softplus(scale_l) * I
    #   M_l[n] @ r[:,n] = vec[:,n]*(vec[:,n].r[:,n]) + scale_l*r[:,n]
    for l in range(layer_num):                            # static unroll
        vec = vecs[l * lat:(l + 1) * lat, :]              # sublane-aligned slice
        s = jnp.sum(vec * r, axis=0, keepdims=True)       # (1, BPS*HW) reduce
        r = vec * s + sc_ref[l] * r                       # VPU FMAs

    # out_proj: out = W_out @ r + b_out  -> (HID, BPS*HW)
    out = jnp.dot(wout_ref[...], r,
                  preferred_element_type=jnp.float32) + bout_ref[...]

    # Split back along lane-tile boundaries and store lane-dense slabs.
    for b in range(batch_per_step):
        o_ref[b] = out[:, b * hw:(b + 1) * hw].astype(o_ref.dtype)


# ------------------------------ wrapper --------------------------------------
def hypernet_forward(x_nchw, var_nchw, proj_w, proj_b, scales,
                     w_in, b_in, w_out, b_out):
    """Composed HyperNet.get_weights + HyperNet.forward.

    x_nchw (B,HID,H,W), var_nchw (B,LAT,H,W) -> (B,HID,H,W).
    """
    b, hid, h, w = x_nchw.shape
    layers, lat, _ = proj_w.shape
    hw = h * w

    x_flat = x_nchw.reshape(b, hid, hw)            # free view, NCHW preserved
    var_flat = var_nchw.reshape(b, lat, hw)        # free view
    abs_scales = jax.nn.softplus(scales)           # overflow-safe softplus

    # Stack all layers' projection params into one matmul LHS.
    pw_stacked = proj_w.reshape(layers * lat, lat)         # (LAYERS*LAT, LAT)
    pb_stacked = proj_b.reshape(layers * lat, 1)           # (LAYERS*LAT, 1)

    # v7x: shard the batch across the 2 TensorCores.  v5e/v6e: single step
    # (extra grid steps only add ~0.35 us each against a sub-microsecond kernel).
    grid_steps = 2 if (_tensorcores_per_chip() >= 2 and b % 2 == 0 and b > 1) else 1
    bps = b // grid_steps
    sem = "parallel" if grid_steps > 1 else "arbitrary"

    kernel = functools.partial(hypernet_fwd_kernel, layers, bps)

    out_flat = pl.pallas_call(
        kernel,
        out_shape=jax.ShapeDtypeStruct((b, hid, hw), x_nchw.dtype),
        grid_spec=pltpu.PrefetchScalarGridSpec(
            num_scalar_prefetch=0,
            grid=(grid_steps,),
            in_specs=[
                pl.BlockSpec((bps, hid, hw), lambda i: (i, 0, 0)),          # x
                pl.BlockSpec((bps, lat, hw), lambda i: (i, 0, 0)),          # var
                pl.BlockSpec((layers * lat, lat), lambda i: (0, 0)),        # proj W (stacked)
                pl.BlockSpec((layers * lat, 1), lambda i: (0, 0)),          # proj b (stacked)
                pl.BlockSpec(memory_space=pltpu.MemorySpace.SMEM),          # softplus(scales)
                pl.BlockSpec((lat, hid), lambda i: (0, 0)),                 # W_in
                pl.BlockSpec((lat, 1), lambda i: (0, 0)),                   # b_in
                pl.BlockSpec((hid, lat), lambda i: (0, 0)),                 # W_out
                pl.BlockSpec((hid, 1), lambda i: (0, 0)),                   # b_out
            ],
            out_specs=pl.BlockSpec((bps, hid, hw), lambda i: (i, 0, 0)),
        ),
        compiler_params=pltpu.CompilerParams(dimension_semantics=(sem,)),
    )(x_flat, var_flat, pw_stacked, pb_stacked, abs_scales,
      w_in, b_in.reshape(lat, 1), w_out, b_out.reshape(hid, 1))

    return out_flat.reshape(b, hid, h, w)          # free view back to NCHW


# --------------------------- pure-JAX reference -------------------------------
def hypernet_forward_ref(x, var, proj_w, proj_b, scales,
                         w_in, b_in, w_out, b_out):
    """Mirrors the PyTorch module exactly (materializes per-pixel matrices)."""
    layers, lat, _ = proj_w.shape
    v = jnp.transpose(var, (0, 2, 3, 1))                     # (B,H,W,LAT)
    abs_scales = jax.nn.softplus(scales)
    eye = jnp.eye(lat, dtype=v.dtype)
    weights = []
    for l in range(layers):
        vec = v @ proj_w[l].T + proj_b[l]                    # (B,H,W,LAT)
        weights.append(vec[..., :, None] * vec[..., None, :] + eye * abs_scales[l])
    r = jnp.transpose(x, (0, 2, 3, 1)) @ w_in.T + b_in       # (B,H,W,LAT)
    r = r[..., None]
    for mat in weights:
        r = jnp.matmul(mat, r)
    r = r[..., 0] @ w_out.T + b_out                          # (B,H,W,HID)
    return jnp.transpose(r, (0, 3, 1, 2))                    # NCHW


# ------------------------------ main -----------------------------------------
if __name__ == "__main__":
    key = jax.random.PRNGKey(0)
    keys = jax.random.split(key, 9)

    # deterministic parameter init (shapes from HyperNet.__init__)
    proj_w = jax.random.normal(keys[0], (LAYERS, LAT, LAT), jnp.float32) * 0.1
    proj_b = jax.random.normal(keys[1], (LAYERS, LAT), jnp.float32) * 0.1
    scales = jax.random.normal(keys[2], (LAYERS,), jnp.float32)
    w_in = jax.random.normal(keys[3], (LAT, HID), jnp.float32) * 0.1   # in_proj.weight
    b_in = jax.random.normal(keys[4], (LAT,), jnp.float32) * 0.1
    w_out = jax.random.normal(keys[5], (HID, LAT), jnp.float32) * 0.1  # out_proj.weight
    b_out = jax.random.normal(keys[6], (HID,), jnp.float32) * 0.1

    # example inputs (NCHW, as PyTorch)
    x = jax.random.normal(keys[7], (B, HID, H, W), jnp.float32)
    var = jax.random.normal(keys[8], (B, LAT, H, W), jnp.float32)

    fwd = jax.jit(hypernet_forward)
    out = fwd(x, var, proj_w, proj_b, scales, w_in, b_in, w_out, b_out)
    out = jax.block_until_ready(out)

    ref = hypernet_forward_ref(x, var, proj_w, proj_b, scales,
                               w_in, b_in, w_out, b_out)
    np.testing.assert_allclose(np.asarray(out), np.asarray(ref),
                               rtol=1e-4, atol=1e-4)
    assert out.shape == (B, HID, H, W)
    print("KERNEL_OK")
</pallas_src>

<mosaic_0001>
module attributes {stable_mosaic.version = 11 : i64} {
  func.func @hypernet_fwd_kernel(%arg0: i32, %arg1: memref<2x32x256xf32, #tpu.memory_space<vmem>>, %arg2: memref<2x8x256xf32, #tpu.memory_space<vmem>>, %arg3: memref<16x8xf32, #tpu.memory_space<vmem>>, %arg4: memref<16x1xf32, #tpu.memory_space<vmem>>, %arg5: memref<2xf32, #tpu.memory_space<smem>>, %arg6: memref<8x32xf32, #tpu.memory_space<vmem>>, %arg7: memref<8x1xf32, #tpu.memory_space<vmem>>, %arg8: memref<32x8xf32, #tpu.memory_space<vmem>>, %arg9: memref<32x1xf32, #tpu.memory_space<vmem>>, %arg10: memref<2x32x256xf32, #tpu.memory_space<vmem>>) attributes {dimension_semantics = [#tpu.dimension_semantics<arbitrary>], iteration_bounds = array<i64: 1>, scalar_prefetch = 0 : i64, scratch_operands = 0 : i64, tpu.core_type = #tpu.core_type<tc>, window_params = [{transform_indices = @transform_0, window_bounds = array<i64: 2, 32, 256>}, {transform_indices = @transform_1, window_bounds = array<i64: 2, 8, 256>}, {pipeline_mode = #tpu.pipeline_mode<synchronous>, transform_indices = @transform_2, window_bounds = array<i64: 16, 8>}, {pipeline_mode = #tpu.pipeline_mode<synchronous>, transform_indices = @transform_3, window_bounds = array<i64: 16, 1>}, {transform_indices = @transform_4, window_bounds = array<i64: 2>}, {pipeline_mode = #tpu.pipeline_mode<synchronous>, transform_indices = @transform_5, window_bounds = array<i64: 8, 32>}, {pipeline_mode = #tpu.pipeline_mode<synchronous>, transform_indices = @transform_6, window_bounds = array<i64: 8, 1>}, {pipeline_mode = #tpu.pipeline_mode<synchronous>, transform_indices = @transform_7, window_bounds = array<i64: 32, 8>}, {pipeline_mode = #tpu.pipeline_mode<synchronous>, transform_indices = @transform_8, window_bounds = array<i64: 32, 1>}, {transform_indices = @transform_9, window_bounds = array<i64: 2, 32, 256>}]} {
    %c0 = arith.constant 0 : index
    %c0_0 = arith.constant 0 : index
    %c0_1 = arith.constant 0 : index
    %0 = vector.load %arg1[%c0, %c0_0, %c0_1] : memref<2x32x256xf32, #tpu.memory_space<vmem>>, vector<1x32x256xf32>
    %1 = vector.shape_cast %0 : vector<1x32x256xf32> to vector<32x256xf32>
    %c1 = arith.constant 1 : index
    %c0_2 = arith.constant 0 : index
    %c0_3 = arith.constant 0 : index
    %2 = vector.load %arg1[%c1, %c0_2, %c0_3] : memref<2x32x256xf32, #tpu.memory_space<vmem>>, vector<1x32x256xf32>
    %3 = vector.shape_cast %2 : vector<1x32x256xf32> to vector<32x256xf32>
    %4 = tpu.concatenate %1, %3 in 1 : vector<32x256xf32>, vector<32x256xf32> -> vector<32x512xf32>
    %c0_4 = arith.constant 0 : index
    %c0_5 = arith.constant 0 : index
    %c0_6 = arith.constant 0 : index
    %5 = vector.load %arg2[%c0_4, %c0_5, %c0_6] : memref<2x8x256xf32, #tpu.memory_space<vmem>>, vector<1x8x256xf32>
    %6 = vector.shape_cast %5 : vector<1x8x256xf32> to vector<8x256xf32>
    %c1_7 = arith.constant 1 : index
    %c0_8 = arith.constant 0 : index
    %c0_9 = arith.constant 0 : index
    %7 = vector.load %arg2[%c1_7, %c0_8, %c0_9] : memref<2x8x256xf32, #tpu.memory_space<vmem>>, vector<1x8x256xf32>
    %8 = vector.shape_cast %7 : vector<1x8x256xf32> to vector<8x256xf32>
    %9 = tpu.concatenate %6, %8 in 1 : vector<8x256xf32>, vector<8x256xf32> -> vector<8x512xf32>
    %c0_10 = arith.constant 0 : index
    %c0_11 = arith.constant 0 : index
    %10 = vector.load %arg6[%c0_10, %c0_11] : memref<8x32xf32, #tpu.memory_space<vmem>>, vector<8x32xf32>
    %cst = arith.constant dense<0.000000e+00> : vector<8x512xf32>
    %11 = tpu.matmul %10, %4, %cst {dimension_numbers = #tpu.dot_dimension_numbers<[1], [0], [0], [1], [0, 0, 1, 1], [], []>} : vector<8x32xf32>, vector<32x512xf32>, vector<8x512xf32> -> vector<8x512xf32>
    %c0_12 = arith.constant 0 : index
    %c0_13 = arith.constant 0 : index
    %12 = vector.load %arg7[%c0_12, %c0_13] : memref<8x1xf32, #tpu.memory_space<vmem>>, vector<8x1xf32>
    %13 = vector.broadcast %12 : vector<8x1xf32> to vector<8x512xf32>
    %14 = arith.addf %11, %13 : vector<8x512xf32>
    %c0_14 = arith.constant 0 : index
    %c0_15 = arith.constant 0 : index
    %15 = vector.load %arg3[%c0_14, %c0_15] : memref<16x8xf32, #tpu.memory_space<vmem>>, vector<16x8xf32>
    %cst_16 = arith.constant dense<0.000000e+00> : vector<16x512xf32>
    %16 = tpu.matmul %15, %9, %cst_16 {dimension_numbers = #tpu.dot_dimension_numbers<[1], [0], [0], [1], [0, 0, 1, 1], [], []>} : vector<16x8xf32>, vector<8x512xf32>, vector<16x512xf32> -> vector<16x512xf32>
    %c0_17 = arith.constant 0 : index
    %c0_18 = arith.constant 0 : index
    %17 = vector.load %arg4[%c0_17, %c0_18] : memref<16x1xf32, #tpu.memory_space<vmem>>, vector<16x1xf32>
    %18 = vector.broadcast %17 : vector<16x1xf32> to vector<16x512xf32>
    %19 = arith.addf %16, %18 : vector<16x512xf32>
    %20 = vector.extract_strided_slice %19 {offsets = [0, 0], sizes = [8, 512], strides = [1, 1]} : vector<16x512xf32> to vector<8x512xf32>
    %21 = arith.mulf %20, %14 : vector<8x512xf32>
    %cst_19 = arith.constant dense<0.000000e+00> : vector<512xf32>
    %22 = vector.multi_reduction <add>, %21, %cst_19 [0] : vector<8x512xf32> to vector<512xf32>
    %23 = vector.shape_cast %22 : vector<512xf32> to vector<1x512xf32>
    %24 = vector.broadcast %23 : vector<1x512xf32> to vector<8x512xf32>
    %25 = arith.mulf %20, %24 : vector<8x512xf32>
    %c0_20 = arith.constant 0 : index
    %26 = memref.load %arg5[%c0_20] : memref<2xf32, #tpu.memory_space<smem>>
    %27 = vector.broadcast %26 : f32 to vector<8x512xf32>
    %28 = arith.mulf %27, %14 : vector<8x512xf32>
    %29 = arith.addf %25, %28 : vector<8x512xf32>
    %30 = vector.extract_strided_slice %19 {offsets = [8, 0], sizes = [8, 512], strides = [1, 1]} : vector<16x512xf32> to vector<8x512xf32>
    %31 = arith.mulf %30, %29 : vector<8x512xf32>
    %cst_21 = arith.constant dense<0.000000e+00> : vector<512xf32>
    %32 = vector.multi_reduction <add>, %31, %cst_21 [0] : vector<8x512xf32> to vector<512xf32>
    %33 = vector.shape_cast %32 : vector<512xf32> to vector<1x512xf32>
    %34 = vector.broadcast %33 : vector<1x512xf32> to vector<8x512xf32>
    %35 = arith.mulf %30, %34 : vector<8x512xf32>
    %c1_22 = arith.constant 1 : index
    %36 = memref.load %arg5[%c1_22] : memref<2xf32, #tpu.memory_space<smem>>
    %37 = vector.broadcast %36 : f32 to vector<8x512xf32>
    %38 = arith.mulf %37, %29 : vector<8x512xf32>
    %39 = arith.addf %35, %38 : vector<8x512xf32>
    %c0_23 = arith.constant 0 : index
    %c0_24 = arith.constant 0 : index
    %40 = vector.load %arg8[%c0_23, %c0_24] : memref<32x8xf32, #tpu.memory_space<vmem>>, vector<32x8xf32>
    %cst_25 = arith.constant dense<0.000000e+00> : vector<32x512xf32>
    %41 = tpu.matmul %40, %39, %cst_25 {dimension_numbers = #tpu.dot_dimension_numbers<[1], [0], [0], [1], [0, 0, 1, 1], [], []>} : vector<32x8xf32>, vector<8x512xf32>, vector<32x512xf32> -> vector<32x512xf32>
    %c0_26 = arith.constant 0 : index
    %c0_27 = arith.constant 0 : index
    %42 = vector.load %arg9[%c0_26, %c0_27] : memref<32x1xf32, #tpu.memory_space<vmem>>, vector<32x1xf32>
    %43 = vector.broadcast %42 : vector<32x1xf32> to vector<32x512xf32>
    %44 = arith.addf %41, %43 : vector<32x512xf32>
    %45 = vector.extract_strided_slice %44 {offsets = [0, 0], sizes = [32, 256], strides = [1, 1]} : vector<32x512xf32> to vector<32x256xf32>
    %c0_28 = arith.constant 0 : index
    %c0_29 = arith.constant 0 : index
    %c0_30 = arith.constant 0 : index
    %46 = vector.load %arg10[%c0_28, %c0_29, %c0_30] : memref<2x32x256xf32, #tpu.memory_space<vmem>>, vector<1x32x256xf32>
    %47 = vector.shape_cast %46 : vector<1x32x256xf32> to vector<32x256xf32>
    %48 = vector.shape_cast %45 : vector<32x256xf32> to vector<1x32x256xf32>
    tpu.vector_store %arg10[%c0_28, %c0_29, %c0_30], %48 {strides = array<i32>} : memref<2x32x256xf32, #tpu.memory_space<vmem>>, vector<1x32x256xf32>,
    %49 = vector.extract_strided_slice %44 {offsets = [0, 256], sizes = [32, 256], strides = [1, 1]} : vector<32x512xf32> to vector<32x256xf32>
    %c1_31 = arith.constant 1 : index
    %c0_32 = arith.constant 0 : index
    %c0_33 = arith.constant 0 : index
    %50 = vector.load %arg10[%c1_31, %c0_32, %c0_33] : memref<2x32x256xf32, #tpu.memory_space<vmem>>, vector<1x32x256xf32>
    %51 = vector.shape_cast %50 : vector<1x32x256xf32> to vector<32x256xf32>
    %52 = vector.shape_cast %49 : vector<32x256xf32> to vector<1x32x256xf32>
    tpu.vector_store %arg10[%c1_31, %c0_32, %c0_33], %52 {strides = array<i32>} : memref<2x32x256xf32, #tpu.memory_space<vmem>>, vector<1x32x256xf32>,
    return
  }
  func.func @transform_0(%arg0: i32) -> (i32, i32, i32) {
    %c0_i32 = arith.constant 0 : i32
    %c0_i32_0 = arith.constant 0 : i32
    %c0_i32_1 = arith.constant 0 : i32
    return %arg0, %c0_i32, %c0_i32_0 : i32, i32, i32
  }
  func.func @transform_1(%arg0: i32) -> (i32, i32, i32) {
    %c0_i32 = arith.constant 0 : i32
    %c0_i32_0 = arith.constant 0 : i32
    %c0_i32_1 = arith.constant 0 : i32
    return %arg0, %c0_i32, %c0_i32_0 : i32, i32, i32
  }
  func.func @transform_2(%arg0: i32) -> (i32, i32) {
    %c0_i32 = arith.constant 0 : i32
    %c0_i32_0 = arith.constant 0 : i32
    %c0_i32_1 = arith.constant 0 : i32
    return %c0_i32, %c0_i32_0 : i32, i32
  }
  func.func @transform_3(%arg0: i32) -> (i32, i32) {
    %c0_i32 = arith.constant 0 : i32
    %c0_i32_0 = arith.constant 0 : i32
    %c0_i32_1 = arith.constant 0 : i32
    return %c0_i32, %c0_i32_0 : i32, i32
  }
  func.func @transform_4(%arg0: i32) -> i32 {
    %c0_i32 = arith.constant 0 : i32
    %c0_i32_0 = arith.constant 0 : i32
    return %c0_i32 : i32
  }
  func.func @transform_5(%arg0: i32) -> (i32, i32) {
    %c0_i32 = arith.constant 0 : i32
    %c0_i32_0 = arith.constant 0 : i32
    %c0_i32_1 = arith.constant 0 : i32
    return %c0_i32, %c0_i32_0 : i32, i32
  }
  func.func @transform_6(%arg0: i32) -> (i32, i32) {
    %c0_i32 = arith.constant 0 : i32
    %c0_i32_0 = arith.constant 0 : i32
    %c0_i32_1 = arith.constant 0 : i32
    return %c0_i32, %c0_i32_0 : i32, i32
  }
  func.func @transform_7(%arg0: i32) -> (i32, i32) {
    %c0_i32 = arith.constant 0 : i32
    %c0_i32_0 = arith.constant 0 : i32
    %c0_i32_1 = arith.constant 0 : i32
    return %c0_i32, %c0_i32_0 : i32, i32
  }
  func.func @transform_8(%arg0: i32) -> (i32, i32) {
    %c0_i32 = arith.constant 0 : i32
    %c0_i32_0 = arith.constant 0 : i32
    %c0_i32_1 = arith.constant 0 : i32
    return %c0_i32, %c0_i32_0 : i32, i32
  }
  func.func @transform_9(%arg0: i32) -> (i32, i32, i32) {
    %c0_i32 = arith.constant 0 : i32
    %c0_i32_0 = arith.constant 0 : i32
    %c0_i32_1 = arith.constant 0 : i32
    return %arg0, %c0_i32, %c0_i32_0 : i32, i32, i32
  }
}

</mosaic_0001>

<llo_original>
// kernel: hypernet_forward.1
$region0: #{hypernet_forward.1}
  #allocation0 [shape = 'u32[]', space=smem, size = 0x4, offset = 0x4, fixed_abs, tag = 'smem constant byte address 0x4 - core index']
  #allocation1 [shape = 'u32[72,128]{1,0:T(1,128)}', space=vmem, size = 0x9000, scoped, tag = 'internal scratch']
  %s0 = inlined_call_operand.vmem [shape: f32[2,32,256], index: 0, kind: input, shape index: {}]
  %s1 = inlined_call_operand.vmem [shape: f32[2,8,256], index: 1, kind: input, shape index: {}]
  %s2 = inlined_call_operand.vmem [shape: f32[16,8], index: 2, kind: input, shape index: {}]
  %s3 = inlined_call_operand.vmem [shape: f32[16,1], index: 3, kind: input, shape index: {}]
  %s4 = inlined_call_operand.vmem [shape: f32[2], index: 4, kind: input, shape index: {}]
  %s5 = inlined_call_operand.vmem [shape: f32[8,32], index: 5, kind: input, shape index: {}]
  %s6 = inlined_call_operand.vmem [shape: f32[8,1], index: 6, kind: input, shape index: {}]
  %s7 = inlined_call_operand.vmem [shape: f32[32,8], index: 7, kind: input, shape index: {}]
  %s8 = inlined_call_operand.vmem [shape: f32[32,1], index: 8, kind: input, shape index: {}]
  %s9 = inlined_call_operand.vmem [shape: f32[2,32,256], index: 9, kind: output, shape index: {}]
  %s10 = sld [smem:[#allocation0]]
  $region50: #{hypernet_forward.1} parent=0
    _
  %s12 = ssub.s32 1, %s10
  %s13 = scalar_select 0, %s12, %s10
  $region1: #{hypernet_forward.1} parent=0
    #allocation2 [shape = 'u8[512]{0}', space=smem, size = 0x200, scoped, tag = 'input window, operand 4, single buffered']
    #allocation3 [shape = 's32[1]{0}', space=sflag, size = 0x4, scoped, tag = 'scoped memory for hypernet_forward.1']
    %14 = vsyncpa [#allocation3], 0
    // Predicated region
    $region2: #{hypernet_forward.1} parent=1 // pred_check
      _
    $region3: #{hypernet_forward.1} parent=1 // pred_check_branch
      %16 = sbr.rel (0) target = $region5
    $region4: #{hypernet_forward.1} parent=1 // pred_region
      _
    $region5: #{hypernet_forward.1} parent=1 // pred_fallthru
      _
    // Predicated region
    $region6: #{hypernet_forward.1} parent=1 // pred_check
      _
    $region7: #{hypernet_forward.1} parent=1 // pred_check_branch
      %18 = sbr.rel (0) target = $region9
    $region8: #{hypernet_forward.1} parent=1 // pred_region
      _
    $region9: #{hypernet_forward.1} parent=1 // pred_fallthru
      _
    // Predicated region
    $region10: #{hypernet_forward.1} parent=1 // pred_check
      _
    $region11: #{hypernet_forward.1} parent=1 // pred_check_branch
      %20 = sbr.rel (0) target = $region13
    $region12: #{hypernet_forward.1} parent=1 // pred_region
      _
    $region13: #{hypernet_forward.1} parent=1 // pred_fallthru
      _
    // Predicated region
    $region14: #{hypernet_forward.1} parent=1 // pred_check
      _
    $region15: #{hypernet_forward.1} parent=1 // pred_check_branch
      %22 = sbr.rel (0) target = $region17
    $region16: #{hypernet_forward.1} parent=1 // pred_region
      _
    $region17: #{hypernet_forward.1} parent=1 // pred_fallthru
      _
    // Predicated region
    $region18: #{hypernet_forward.1} parent=1 // pred_check
      _
    $region19: #{hypernet_forward.1} parent=1 // pred_check_branch
      %24 = sbr.rel (0) target = $region21
    $region20: #{hypernet_forward.1} parent=1 // pred_region
      %26 = vsyncadd [#allocation3], 0
      %s28 = sshll.u32 %s4, 4
      %s29 = int_to_ptr.vmem [resolvable:$true] %s28
      %31 = dma.vmem_to_smem %s29, 16, [#allocation2], [#allocation3]
    $region21: #{hypernet_forward.1} parent=1 // pred_fallthru
      _
    // Predicated region
    $region22: #{hypernet_forward.1} parent=1 // pred_check
      _
    $region23: #{hypernet_forward.1} parent=1 // pred_check_branch
      %33 = sbr.rel (0) target = $region25
    $region24: #{hypernet_forward.1} parent=1 // pred_region
      _
    $region25: #{hypernet_forward.1} parent=1 // pred_fallthru
      _
    // Predicated region
    $region26: #{hypernet_forward.1} parent=1 // pred_check
      _
    $region27: #{hypernet_forward.1} parent=1 // pred_check_branch
      %35 = sbr.rel (0) target = $region29
    $region28: #{hypernet_forward.1} parent=1 // pred_region
      _
    $region29: #{hypernet_forward.1} parent=1 // pred_fallthru
      _
    // Predicated region
    $region30: #{hypernet_forward.1} parent=1 // pred_check
      _
    $region31: #{hypernet_forward.1} parent=1 // pred_check_branch
      %37 = sbr.rel (0) target = $region33
    $region32: #{hypernet_forward.1} parent=1 // pred_region
      _
    $region33: #{hypernet_forward.1} parent=1 // pred_fallthru
      _
    // Predicated region
    $region34: #{hypernet_forward.1} parent=1 // pred_check
      _
    $region35: #{hypernet_forward.1} parent=1 // pred_check_branch
      %39 = sbr.rel (0) target = $region37
    $region36: #{hypernet_forward.1} parent=1 // pred_region
      _
    $region37: #{hypernet_forward.1} parent=1 // pred_fallthru
      _
    // Predicated region
    $region38: #{hypernet_forward.1} parent=1 // pred_check
      _
    $region39: #{hypernet_forward.1} parent=1 // pred_check_branch
      %41 = sbr.rel (0) target = $region41
    $region40: #{hypernet_forward.1} parent=1 // pred_region
      %43 = dma.done [#allocation3], 16
    $region41: #{hypernet_forward.1} parent=1 // pred_fallthru
      _
    %44 = sfence
    %v45 = vld [vmem:[%s0] sm:$0xff]
    %v46 = vld [vmem:[%s0 + $0x8] sm:$0xff]
    %v47 = vld [vmem:[%s0 + $0x10] sm:$0xff]
    %v48 = vld [vmem:[%s0 + $0x18] sm:$0xff]
    %v49 = vld [vmem:[%s0 + $0x20] sm:$0xff]
    %v50 = vld [vmem:[%s0 + $0x28] sm:$0xff]
    %v51 = vld [vmem:[%s0 + $0x30] sm:$0xff]
    %v52 = vld [vmem:[%s0 + $0x38] sm:$0xff]
    %s53 = scalar_lea.vmem %s0, 64
    %v54 = vld [vmem:[%s53] sm:$0xff]
    %v55 = vld [vmem:[%s53 + $0x8] sm:$0xff]
    %v56 = vld [vmem:[%s53 + $0x10] sm:$0xff]
    %v57 = vld [vmem:[%s53 + $0x18] sm:$0xff]
    %v58 = vld [vmem:[%s53 + $0x20] sm:$0xff]
    %v59 = vld [vmem:[%s53 + $0x28] sm:$0xff]
    %v60 = vld [vmem:[%s53 + $0x30] sm:$0xff]
    %v61 = vld [vmem:[%s53 + $0x38] sm:$0xff]
    %v62 = vld [vmem:[%s1] sm:$0xff]
    %v63 = vld [vmem:[%s1 + $0x8] sm:$0xff]
    %s64 = scalar_lea.vmem %s1, 16
    %v65 = vld [vmem:[%s64] sm:$0xff]
    %v66 = vld [vmem:[%s64 + $0x8] sm:$0xff]
    %v67 = vld [vmem:[%s5] sm:$0xff]
    %v68 = vld [vmem:[%s6] sm:$0xff]
    %70 = vset.pattern.permute.xlu0 0
    %71 = vperm.xlu0 %70, %v68
    %v72 = vpop.permute.xlu0 %71
    %vm74 = vcmask 261120
    %v76 = vsel %vm74, %v67, 0
    %78 = vmatpush.msra.mxu0 0.0
    %79 = vmatpush.msra.mxu0 0.0
    %80 = vmatpush.msra.mxu0 0.0
    %81 = vmatpush.msra.mxu0 0.0
    %82 = vmatpush.msra.mxu0 0.0
    %83 = vmatpush.msra.mxu0 0.0
    %84 = vmatpush.msra.mxu0 0.0
    %85 = vmatpush.msra.mxu0 0.0
    %86 = vmatpush.msra.mxu0 0.0
    %87 = vmatpush.msra.mxu0 0.0
    %88 = vmatpush.msra.mxu0 0.0
    %89 = vmatpush.msra.mxu0 0.0
    %90 = vmatpush.msra.mxu0 %v51
    %91 = vmatpush.msra.mxu0 %v49
    %92 = vmatpush.msra.mxu0 %v47
    %93 = vmatpush.msra.mxu0 %v45
    %94 = vmatmul.f32.gmra.mxu0 %v76
    %v95 = vpop.f32.mrf.mxu0
    %v96 = vadd.f32 %v72, %v95
    %97 = vdwg.mxu0
    %98 = vmatpush.msra.mxu0 0.0
    %99 = vmatpush.msra.mxu0 0.0
    %100 = vmatpush.msra.mxu0 0.0
    %101 = vmatpush.msra.mxu0 0.0
    %102 = vmatpush.msra.mxu0 0.0
    %103 = vmatpush.msra.mxu0 0.0
    %104 = vmatpush.msra.mxu0 0.0
    %105 = vmatpush.msra.mxu0 0.0
    %106 = vmatpush.msra.mxu0 0.0
    %107 = vmatpush.msra.mxu0 0.0
    %108 = vmatpush.msra.mxu0 0.0
    %109 = vmatpush.msra.mxu0 0.0
    %110 = vmatpush.msra.mxu0 %v52
    %111 = vmatpush.msra.mxu0 %v50
    %112 = vmatpush.msra.mxu0 %v48
    %113 = vmatpush.msra.mxu0 %v46
    %114 = vmatmul.f32.gmra.mxu0 %v76
    %v115 = vpop.f32.mrf.mxu0
    %v116 = vadd.f32 %v72, %v115
    %117 = vdwg.mxu0
    %118 = vmatpush.msra.mxu0 0.0
    %119 = vmatpush.msra.mxu0 0.0
    %120 = vmatpush.msra.mxu0 0.0
    %121 = vmatpush.msra.mxu0 0.0
    %122 = vmatpush.msra.mxu0 0.0
    %123 = vmatpush.msra.mxu0 0.0
    %124 = vmatpush.msra.mxu0 0.0
    %125 = vmatpush.msra.mxu0 0.0
    %126 = vmatpush.msra.mxu0 0.0
    %127 = vmatpush.msra.mxu0 0.0
    %128 = vmatpush.msra.mxu0 0.0
    %129 = vmatpush.msra.mxu0 0.0
    %130 = vmatpush.msra.mxu0 %v60
    %131 = vmatpush.msra.mxu0 %v58
    %132 = vmatpush.msra.mxu0 %v56
    %133 = vmatpush.msra.mxu0 %v54
    %134 = vmatmul.f32.gmra.mxu0 %v76
    %v135 = vpop.f32.mrf.mxu0
    %v136 = vadd.f32 %v72, %v135
    %137 = vdwg.mxu0
    %138 = vmatpush.msra.mxu0 0.0
    %139 = vmatpush.msra.mxu0 0.0
    %140 = vmatpush.msra.mxu0 0.0
    %141 = vmatpush.msra.mxu0 0.0
    %142 = vmatpush.msra.mxu0 0.0
    %143 = vmatpush.msra.mxu0 0.0
    %144 = vmatpush.msra.mxu0 0.0
    %145 = vmatpush.msra.mxu0 0.0
    %146 = vmatpush.msra.mxu0 0.0
    %147 = vmatpush.msra.mxu0 0.0
    %148 = vmatpush.msra.mxu0 0.0
    %149 = vmatpush.msra.mxu0 0.0
    %150 = vmatpush.msra.mxu0 %v61
    %151 = vmatpush.msra.mxu0 %v59
    %152 = vmatpush.msra.mxu0 %v57
    %153 = vmatpush.msra.mxu0 %v55
    %154 = vmatmul.f32.gmra.mxu0 %v76
    %v155 = vpop.f32.mrf.mxu0
    %v156 = vadd.f32 %v72, %v155
    %157 = vdwg.mxu0
    %v158 = vld [vmem:[%s2] sm:$0xff]
    %v159 = vld [vmem:[%s2 + $0x8] sm:$0xff]
    %v160 = vld [vmem:[%s3] sm:$0xff]
    %v161 = vld [vmem:[%s3 + $0x8] sm:$0xff]
    %163 = vset.pattern.permute.xlu0 0
    %164 = vperm.xlu0 %163, %v160
    %v165 = vpop.permute.xlu0 %164
    %168 = vset.pattern.permute.xlu0 0
    %169 = vperm.xlu0 %168, %v161
    %v170 = vpop.permute.xlu0 %169
    %vm172 = vcmask 64512
    %v174 = vsel %vm172, %v158, 0
    %v177 = vsel %vm172, %v159, 0
    %179 = vmatpush.msra.mxu0 0.0
    %180 = vmatpush.msra.mxu0 0.0
    %181 = vmatpush.msra.mxu0 0.0
    %182 = vmatpush.msra.mxu0 0.0
    %183 = vmatpush.msra.mxu0 0.0
    %184 = vmatpush.msra.mxu0 0.0
    %185 = vmatpush.msra.mxu0 0.0
    %186 = vmatpush.msra.mxu0 0.0
    %187 = vmatpush.msra.mxu0 0.0
    %188 = vmatpush.msra.mxu0 0.0
    %189 = vmatpush.msra.mxu0 0.0
    %190 = vmatpush.msra.mxu0 0.0
    %191 = vmatpush.msra.mxu0 0.0
    %192 = vmatpush.msra.mxu0 0.0
    %193 = vmatpush.msra.mxu0 0.0
    %194 = vmatpush.msra.mxu0 %v62
    %195 = vmatmul.f32.gmra.mxu0 %v174
    %v196 = vpop.f32.mrf.mxu0
    %v197 = vadd.f32 %v165, %v196
    %198 = vmatmul.f32.gmra.mxu0 %v177
    %v199 = vpop.f32.mrf.mxu0
    %v200 = vadd.f32 %v170, %v199
    %201 = vdwg.mxu0
    %202 = vmatpush.msra.mxu0 0.0
    %203 = vmatpush.msra.mxu0 0.0
    %204 = vmatpush.msra.mxu0 0.0
    %205 = vmatpush.msra.mxu0 0.0
    %206 = vmatpush.msra.mxu0 0.0
    %207 = vmatpush.msra.mxu0 0.0
    %208 = vmatpush.msra.mxu0 0.0
    %209 = vmatpush.msra.mxu0 0.0
    %210 = vmatpush.msra.mxu0 0.0
    %211 = vmatpush.msra.mxu0 0.0
    %212 = vmatpush.msra.mxu0 0.0
    %213 = vmatpush.msra.mxu0 0.0
    %214 = vmatpush.msra.mxu0 0.0
    %215 = vmatpush.msra.mxu0 0.0
    %216 = vmatpush.msra.mxu0 0.0
    %217 = vmatpush.msra.mxu0 %v63
    %218 = vmatmul.f32.gmra.mxu0 %v174
    %v219 = vpop.f32.mrf.mxu0
    %v220 = vadd.f32 %v165, %v219
    %221 = vmatmul.f32.gmra.mxu0 %v177
    %v222 = vpop.f32.mrf.mxu0
    %v223 = vadd.f32 %v170, %v222
    %224 = vdwg.mxu0
    %225 = vmatpush.msra.mxu0 0.0
    %226 = vmatpush.msra.mxu0 0.0
    %227 = vmatpush.msra.mxu0 0.0
    %228 = vmatpush.msra.mxu0 0.0
    %229 = vmatpush.msra.mxu0 0.0
    %230 = vmatpush.msra.mxu0 0.0
    %231 = vmatpush.msra.mxu0 0.0
    %232 = vmatpush.msra.mxu0 0.0
    %233 = vmatpush.msra.mxu0 0.0
    %234 = vmatpush.msra.mxu0 0.0
    %235 = vmatpush.msra.mxu0 0.0
    %236 = vmatpush.msra.mxu0 0.0
    %237 = vmatpush.msra.mxu0 0.0
    %238 = vmatpush.msra.mxu0 0.0
    %239 = vmatpush.msra.mxu0 0.0
    %240 = vmatpush.msra.mxu0 %v65
    %241 = vmatmul.f32.gmra.mxu0 %v174
    %v242 = vpop.f32.mrf.mxu0
    %v243 = vadd.f32 %v165, %v242
    %244 = vmatmul.f32.gmra.mxu0 %v177
    %v245 = vpop.f32.mrf.mxu0
    %v246 = vadd.f32 %v170, %v245
    %247 = vdwg.mxu0
    %248 = vmatpush.msra.mxu0 0.0
    %249 = vmatpush.msra.mxu0 0.0
    %250 = vmatpush.msra.mxu0 0.0
    %251 = vmatpush.msra.mxu0 0.0
    %252 = vmatpush.msra.mxu0 0.0
    %253 = vmatpush.msra.mxu0 0.0
    %254 = vmatpush.msra.mxu0 0.0
    %255 = vmatpush.msra.mxu0 0.0
    %256 = vmatpush.msra.mxu0 0.0
    %257 = vmatpush.msra.mxu0 0.0
    %258 = vmatpush.msra.mxu0 0.0
    %259 = vmatpush.msra.mxu0 0.0
    %260 = vmatpush.msra.mxu0 0.0
    %261 = vmatpush.msra.mxu0 0.0
    %262 = vmatpush.msra.mxu0 0.0
    %263 = vmatpush.msra.mxu0 %v66
    %264 = vmatmul.f32.gmra.mxu0 %v174
    %v265 = vpop.f32.mrf.mxu0
    %v266 = vadd.f32 %v165, %v265
    %267 = vmatmul.f32.gmra.mxu0 %v177
    %v268 = vpop.f32.mrf.mxu0
    %v269 = vadd.f32 %v170, %v268
    %270 = vdwg.mxu0
    %v271 = vmul.f32 %v197, %v96
    %v272 = vmul.f32 %v220, %v116
    %v273 = vmul.f32 %v243, %v136
    %v274 = vmul.f32 %v266, %v156
    %v275 = vrot.slane %v271, 4
    %v276 = vadd.f32 %v271, %v275
    %v277 = vrot.slane %v276, 2
    %v278 = vadd.f32 %v276, %v277
    %v279 = vrot.slane %v278, 1
    %v280 = vadd.f32 %v278, %v279
    %v281 = vrot.slane %v272, 4
    %v282 = vadd.f32 %v272, %v281
    %v283 = vrot.slane %v282, 2
    %v284 = vadd.f32 %v282, %v283
    %v285 = vrot.slane %v284, 1
    %v286 = vadd.f32 %v284, %v285
    %v287 = vrot.slane %v273, 4
    %v288 = vadd.f32 %v273, %v287
    %v289 = vrot.slane %v288, 2
    %v290 = vadd.f32 %v288, %v289
    %v291 = vrot.slane %v290, 1
    %v292 = vadd.f32 %v290, %v291
    %v293 = vrot.slane %v274, 4
    %v294 = vadd.f32 %v274, %v293
    %v295 = vrot.slane %v294, 2
    %v296 = vadd.f32 %v294, %v295
    %v297 = vrot.slane %v296, 1
    %v298 = vadd.f32 %v296, %v297
    %v299 = vmul.f32 %v197, %v280
    %v300 = vmul.f32 %v220, %v286
    %v301 = vmul.f32 %v243, %v292
    %v302 = vmul.f32 %v266, %v298
    %s303 = sld [smem:[#allocation2]]
    %v304 = vstv %s303
    %v305 = vmul.f32 %v304, %v96
    %v306 = vmul.f32 %v304, %v116
    %v307 = vmul.f32 %v304, %v136
    %v308 = vmul.f32 %v304, %v156
    %v309 = vadd.f32 %v299, %v305
    %v310 = vadd.f32 %v300, %v306
    %v311 = vadd.f32 %v301, %v307
    %v312 = vadd.f32 %v302, %v308
    %v313 = vmul.f32 %v200, %v309
    %v314 = vmul.f32 %v223, %v310
    %v315 = vmul.f32 %v246, %v311
    %v316 = vmul.f32 %v269, %v312
    %v317 = vrot.slane %v313, 4
    %v318 = vadd.f32 %v313, %v317
    %v319 = vrot.slane %v318, 2
    %v320 = vadd.f32 %v318, %v319
    %v321 = vrot.slane %v320, 1
    %v322 = vadd.f32 %v320, %v321
    %v323 = vrot.slane %v314, 4
    %v324 = vadd.f32 %v314, %v323
    %v325 = vrot.slane %v324, 2
    %v326 = vadd.f32 %v324, %v325
    %v327 = vrot.slane %v326, 1
    %v328 = vadd.f32 %v326, %v327
    %v329 = vrot.slane %v315, 4
    %v330 = vadd.f32 %v315, %v329
    %v331 = vrot.slane %v330, 2
    %v332 = vadd.f32 %v330, %v331
    %v333 = vrot.slane %v332, 1
    %v334 = vadd.f32 %v332, %v333
    %v335 = vrot.slane %v316, 4
    %v336 = vadd.f32 %v316, %v335
    %v337 = vrot.slane %v336, 2
    %v338 = vadd.f32 %v336, %v337
    %v339 = vrot.slane %v338, 1
    %v340 = vadd.f32 %v338, %v339
    %v341 = vmul.f32 %v200, %v322
    %v342 = vmul.f32 %v223, %v328
    %v343 = vmul.f32 %v246, %v334
    %v344 = vmul.f32 %v269, %v340
    %s345 = sld [smem:[#allocation2 + $0x1]]
    %v346 = vstv %s345
    %v347 = vmul.f32 %v346, %v309
    %v348 = vmul.f32 %v346, %v310
    %v349 = vmul.f32 %v346, %v311
    %v350 = vmul.f32 %v346, %v312
    %v351 = vadd.f32 %v341, %v347
    %v352 = vadd.f32 %v342, %v348
    %v353 = vadd.f32 %v343, %v349
    %v354 = vadd.f32 %v344, %v350
    %v355 = vld [vmem:[%s7] sm:$0xff]
    %v356 = vld [vmem:[%s7 + $0x8] sm:$0xff]
    %v357 = vld [vmem:[%s7 + $0x10] sm:$0xff]
    %v358 = vld [vmem:[%s7 + $0x18] sm:$0xff]
    %v359 = vld [vmem:[%s8] sm:$0xff]
    %v360 = vld [vmem:[%s8 + $0x8] sm:$0xff]
    %v361 = vld [vmem:[%s8 + $0x10] sm:$0xff]
    %v362 = vld [vmem:[%s8 + $0x18] sm:$0xff]
    %364 = vset.pattern.permute.xlu0 0
    %365 = vperm.xlu0 %364, %v359
    %v366 = vpop.permute.xlu0 %365
    %369 = vset.pattern.permute.xlu0 0
    %370 = vperm.xlu0 %369, %v360
    %v371 = vpop.permute.xlu0 %370
    %374 = vset.pattern.permute.xlu0 0
    %375 = vperm.xlu0 %374, %v361
    %v376 = vpop.permute.xlu0 %375
    %379 = vset.pattern.permute.xlu0 0
    %380 = vperm.xlu0 %379, %v362
    %v381 = vpop.permute.xlu0 %380
    %v384 = vsel %vm172, %v355, 0
    %v387 = vsel %vm172, %v356, 0
    %v390 = vsel %vm172, %v357, 0
    %v393 = vsel %vm172, %v358, 0
    %395 = vmatpush.msra.mxu0 0.0
    %396 = vmatpush.msra.mxu0 0.0
    %397 = vmatpush.msra.mxu0 0.0
    %398 = vmatpush.msra.mxu0 0.0
    %399 = vmatpush.msra.mxu0 0.0
    %400 = vmatpush.msra.mxu0 0.0
    %401 = vmatpush.msra.mxu0 0.0
    %402 = vmatpush.msra.mxu0 0.0
    %403 = vmatpush.msra.mxu0 0.0
    %404 = vmatpush.msra.mxu0 0.0
    %405 = vmatpush.msra.mxu0 0.0
    %406 = vmatpush.msra.mxu0 0.0
    %407 = vmatpush.msra.mxu0 0.0
    %408 = vmatpush.msra.mxu0 0.0
    %409 = vmatpush.msra.mxu0 0.0
    %410 = vmatpush.msra.mxu0 %v351
    %411 = vmatmul.f32.gmra.mxu0 %v384
    %v412 = vpop.f32.mrf.mxu0
    %v413 = vadd.f32 %v366, %v412
    %414 = vmatmul.f32.gmra.mxu0 %v387
    %v415 = vpop.f32.mrf.mxu0
    %v416 = vadd.f32 %v371, %v415
    %417 = vmatmul.f32.gmra.mxu0 %v390
    %v418 = vpop.f32.mrf.mxu0
    %v419 = vadd.f32 %v376, %v418
    %420 = vmatmul.f32.gmra.mxu0 %v393
    %v421 = vpop.f32.mrf.mxu0
    %v422 = vadd.f32 %v381, %v421
    %423 = vdwg.mxu0
    %424 = vmatpush.msra.mxu0 0.0
    %425 = vmatpush.msra.mxu0 0.0
    %426 = vmatpush.msra.mxu0 0.0
    %427 = vmatpush.msra.mxu0 0.0
    %428 = vmatpush.msra.mxu0 0.0
    %429 = vmatpush.msra.mxu0 0.0
    %430 = vmatpush.msra.mxu0 0.0
    %431 = vmatpush.msra.mxu0 0.0
    %432 = vmatpush.msra.mxu0 0.0
    %433 = vmatpush.msra.mxu0 0.0
    %434 = vmatpush.msra.mxu0 0.0
    %435 = vmatpush.msra.mxu0 0.0
    %436 = vmatpush.msra.mxu0 0.0
    %437 = vmatpush.msra.mxu0 0.0
    %438 = vmatpush.msra.mxu0 0.0
    %439 = vmatpush.msra.mxu0 %v352
    %440 = vmatmul.f32.gmra.mxu0 %v384
    %v441 = vpop.f32.mrf.mxu0
    %v442 = vadd.f32 %v366, %v441
    %443 = vmatmul.f32.gmra.mxu0 %v387
    %v444 = vpop.f32.mrf.mxu0
    %v445 = vadd.f32 %v371, %v444
    %446 = vmatmul.f32.gmra.mxu0 %v390
    %v447 = vpop.f32.mrf.mxu0
    %v448 = vadd.f32 %v376, %v447
    %449 = vmatmul.f32.gmra.mxu0 %v393
    %v450 = vpop.f32.mrf.mxu0
    %v451 = vadd.f32 %v381, %v450
    %452 = vdwg.mxu0
    %453 = vmatpush.msra.mxu0 0.0
    %454 = vmatpush.msra.mxu0 0.0
    %455 = vmatpush.msra.mxu0 0.0
    %456 = vmatpush.msra.mxu0 0.0
    %457 = vmatpush.msra.mxu0 0.0
    %458 = vmatpush.msra.mxu0 0.0
    %459 = vmatpush.msra.mxu0 0.0
    %460 = vmatpush.msra.mxu0 0.0
    %461 = vmatpush.msra.mxu0 0.0
    %462 = vmatpush.msra.mxu0 0.0
    %463 = vmatpush.msra.mxu0 0.0
    %464 = vmatpush.msra.mxu0 0.0
    %465 = vmatpush.msra.mxu0 0.0
    %466 = vmatpush.msra.mxu0 0.0
    %467 = vmatpush.msra.mxu0 0.0
    %468 = vmatpush.msra.mxu0 %v353
    %469 = vmatmul.f32.gmra.mxu0 %v384
    %v470 = vpop.f32.mrf.mxu0
    %v471 = vadd.f32 %v366, %v470
    %472 = vmatmul.f32.gmra.mxu0 %v387
    %v473 = vpop.f32.mrf.mxu0
    %v474 = vadd.f32 %v371, %v473
    %475 = vmatmul.f32.gmra.mxu0 %v390
    %v476 = vpop.f32.mrf.mxu0
    %v477 = vadd.f32 %v376, %v476
    %478 = vmatmul.f32.gmra.mxu0 %v393
    %v479 = vpop.f32.mrf.mxu0
    %v480 = vadd.f32 %v381, %v479
    %481 = vdwg.mxu0
    %482 = vmatpush.msra.mxu0 0.0
    %483 = vmatpush.msra.mxu0 0.0
    %484 = vmatpush.msra.mxu0 0.0
    %485 = vmatpush.msra.mxu0 0.0
    %486 = vmatpush.msra.mxu0 0.0
    %487 = vmatpush.msra.mxu0 0.0
    %488 = vmatpush.msra.mxu0 0.0
    %489 = vmatpush.msra.mxu0 0.0
    %490 = vmatpush.msra.mxu0 0.0
    %491 = vmatpush.msra.mxu0 0.0
    %492 = vmatpush.msra.mxu0 0.0
    %493 = vmatpush.msra.mxu0 0.0
    %494 = vmatpush.msra.mxu0 0.0
    %495 = vmatpush.msra.mxu0 0.0
    %496 = vmatpush.msra.mxu0 0.0
    %497 = vmatpush.msra.mxu0 %v354
    %498 = vmatmul.f32.gmra.mxu0 %v384
    %v499 = vpop.f32.mrf.mxu0
    %v500 = vadd.f32 %v366, %v499
    %501 = vmatmul.f32.gmra.mxu0 %v387
    %v502 = vpop.f32.mrf.mxu0
    %v503 = vadd.f32 %v371, %v502
    %504 = vmatmul.f32.gmra.mxu0 %v390
    %v505 = vpop.f32.mrf.mxu0
    %v506 = vadd.f32 %v376, %v505
    %507 = vmatmul.f32.gmra.mxu0 %v393
    %v508 = vpop.f32.mrf.mxu0
    %v509 = vadd.f32 %v381, %v508
    %510 = vdwg.mxu0
    %511 = vst [vmem:[%s9] sm:$0xff] %v413
    %512 = vst [vmem:[%s9 + $0x8] sm:$0xff] %v442
    %513 = vst [vmem:[%s9 + $0x10] sm:$0xff] %v416
    %514 = vst [vmem:[%s9 + $0x18] sm:$0xff] %v445
    %515 = vst [vmem:[%s9 + $0x20] sm:$0xff] %v419
    %516 = vst [vmem:[%s9 + $0x28] sm:$0xff] %v448
    %517 = vst [vmem:[%s9 + $0x30] sm:$0xff] %v422
    %518 = vst [vmem:[%s9 + $0x38] sm:$0xff] %v451
    %s519 = scalar_lea.vmem %s9, 64
    %520 = vst [vmem:[%s519] sm:$0xff] %v471
    %521 = vst [vmem:[%s519 + $0x8] sm:$0xff] %v500
    %522 = vst [vmem:[%s519 + $0x10] sm:$0xff] %v474
    %523 = vst [vmem:[%s519 + $0x18] sm:$0xff] %v503
    %524 = vst [vmem:[%s519 + $0x20] sm:$0xff] %v477
    %525 = vst [vmem:[%s519 + $0x28] sm:$0xff] %v506
    %526 = vst [vmem:[%s519 + $0x30] sm:$0xff] %v480
    %527 = vst [vmem:[%s519 + $0x38] sm:$0xff] %v509
    // Predicated region
    $region42: #{hypernet_forward.1} parent=1 // pred_check
      _
    $region43: #{hypernet_forward.1} parent=1 // pred_check_branch
      %529 = sbr.rel (0) target = $region45
    $region44: #{hypernet_forward.1} parent=1 // pred_region
      _
    $region45: #{hypernet_forward.1} parent=1 // pred_fallthru
      _
    // Predicated region
    $region46: #{hypernet_forward.1} parent=1 // pred_check
      _
    $region47: #{hypernet_forward.1} parent=1 // pred_check_branch
      %531 = sbr.rel (0) target = $region49
    $region48: #{hypernet_forward.1} parent=1 // pred_region
      _
    $region49: #{hypernet_forward.1} parent=1 // pred_fallthru
      _
    %532 = vsyncpa [#allocation3], 1

</llo_original>
